<compile_context>
chip_gen: v7x
topology: tpu7x:2x2x1
jax: 0.10.0
libtpu: 0.0.40
codegen_flags: <defaults>
</compile_context>

<pallas_src>
import jax
import jax.numpy as jnp
from jax import lax
from jax.experimental import pallas as pl
from jax.experimental.pallas import tpu as pltpu


def _round_up(v, m):
    return ((v + m - 1) // m) * m


def _two_fc_kernel(x_ref, w6_ref, b6_ref, w7_ref, b7_ref, o_ref, acc_ref):
    """One (n-tile, k-tile) grid step.

    x_ref  : (TN, TK)   compute dtype
    w6_ref : (Dh, TK)   compute dtype, PyTorch (out, in) layout, K-sliced
    b6_ref : (1, Dh)    f32 (resident)
    w7_ref : (Dh, Dh)   compute dtype, PyTorch (out, in) layout (resident)
    b7_ref : (1, Dh)    f32 (resident)
    o_ref  : (TN, Dh)   output dtype
    acc_ref: (TN, Dh)   f32 accumulator, persistent across the K axis
    """
    k = pl.program_id(1)

    @pl.when(k == 0)
    def _():
        acc_ref[...] = jnp.zeros_like(acc_ref)

    # fc6 partial sum: contract x (TN, TK) with w6 (Dh, TK) over the K axis.
    acc_ref[...] += lax.dot_general(
        x_ref[...], w6_ref[...],
        dimension_numbers=(((1,), (1,)), ((), ())),
        preferred_element_type=jnp.float32)

    @pl.when(k == pl.num_programs(1) - 1)
    def _():
        # Epilogue only on the last K step: bias6 + ReLU (f32), fc7, bias7 + ReLU.
        h = jnp.maximum(acc_ref[...] + b6_ref[...], 0.0)
        y = lax.dot_general(
            h.astype(w7_ref.dtype), w7_ref[...],
            dimension_numbers=(((1,), (1,)), ((), ())),
            preferred_element_type=jnp.float32)
        y = jnp.maximum(y + b7_ref[...], 0.0)
        o_ref[...] = y.astype(o_ref.dtype)


def two_fc_head(x, w6, b6, w7, b7, *, compute_dtype=None,
                tile_n=128, tile_k=512):
    """Fused TwoFCHead forward.

    x  : (N, C, H, W)
    w6 : (Dh, Din)  PyTorch nn.Linear layout (out_features, in_features)
    b6 : (Dh,)
    w7 : (Dh, Dh)
    b7 : (Dh,)
    returns (N, Dh) in x.dtype
    """
    n = x.shape[0]
    x_flat = x.reshape(n, -1)                 # flatten(start_dim=1), row-major NCHW
    d_in = x_flat.shape[1]
    d_h = w6.shape[0]
    out_dtype = x.dtype
    if compute_dtype is None:
        compute_dtype = x.dtype

    # ---- tile sizes (N rows multiple of 8; K tile multiple of 128) ----
    tn = min(tile_n, _round_up(n, 8))
    n_pad = _round_up(n, tn)

    din_128 = _round_up(d_in, 128)
    tk = None
    for cand in range(min(tile_k, din_128), 0, -128):  # largest divisor of din_128
        if din_128 % cand == 0:
            tk = cand
            break
    if tk is None:
        tk = min(tile_k, din_128)
    din_pad = _round_up(din_128, tk)

    # ---- dtype + padding (zero-padding the contraction dim is exact) ----
    xp = x_flat.astype(compute_dtype)
    if n_pad != n or din_pad != d_in:
        xp = jnp.pad(xp, ((0, n_pad - n), (0, din_pad - d_in)))
    w6p = w6.astype(compute_dtype)
    if din_pad != d_in:
        w6p = jnp.pad(w6p, ((0, 0), (0, din_pad - d_in)))
    w7p = w7.astype(compute_dtype)
    b6_2d = b6.reshape(1, d_h).astype(jnp.float32)
    b7_2d = b7.reshape(1, d_h).astype(jnp.float32)

    grid = (n_pad // tn, din_pad // tk)       # K (reduction) axis last

    # ---- VMEM budget: double-buffered x/w6/out + resident w7/biases + acc ----
    cbytes = jnp.dtype(compute_dtype).itemsize
    obytes = jnp.dtype(out_dtype).itemsize
    vmem_budget = (2 * tn * tk * cbytes          # x (double buffered)
                   + 2 * d_h * tk * cbytes       # w6 (double buffered)
                   + d_h * d_h * cbytes          # w7 (resident)
                   + 2 * 8 * d_h * 4             # biases (sublane padded)
                   + tn * d_h * 4                # f32 accumulator
                   + 2 * tn * d_h * obytes)      # out (double buffered)
    vmem_limit = min(max(int(vmem_budget * 1.5) + (2 << 20), 8 << 20), 100 << 20)

    cost = pl.CostEstimate(
        flops=2 * n_pad * din_pad * d_h + 2 * n_pad * d_h * d_h,
        transcendentals=0,
        bytes_accessed=(xp.size * cbytes + w6p.size * cbytes
                        + w7p.size * cbytes + n_pad * d_h * obytes))

    out = pl.pallas_call(
        _two_fc_kernel,
        out_shape=jax.ShapeDtypeStruct((n_pad, d_h), out_dtype),
        grid=grid,
        in_specs=[
            pl.BlockSpec((tn, tk), lambda i, k: (i, k)),      # x tile
            pl.BlockSpec((d_h, tk), lambda i, k: (0, k)),     # w6 (out, in) slab
            pl.BlockSpec((1, d_h), lambda i, k: (0, 0)),      # b6 (resident)
            pl.BlockSpec((d_h, d_h), lambda i, k: (0, 0)),    # w7 (resident)
            pl.BlockSpec((1, d_h), lambda i, k: (0, 0)),      # b7 (resident)
        ],
        out_specs=pl.BlockSpec((tn, d_h), lambda i, k: (i, 0)),
        scratch_shapes=[pltpu.VMEM((tn, d_h), jnp.float32)],
        compiler_params=pltpu.CompilerParams(
            dimension_semantics=("parallel", "arbitrary"),
            vmem_limit_bytes=vmem_limit),
        cost_estimate=cost,
    )(xp, w6p, b6_2d, w7p, b7_2d)

    if n_pad != n:
        out = out[:n]
    return out


def _reference(x, w6, b6, w7, b7):
    xf = x.reshape(x.shape[0], -1)
    h = jnp.maximum(xf @ w6.T + b6, 0.0)
    return jnp.maximum(h @ w7.T + b7, 0.0)


if __name__ == "__main__":
    # Small shapes implied by the module: RoI features (N, C, H, W) flattened
    # into in_channels = C*H*W, then two fc layers of width fc_feat_channels.
    N, C, H, W = 8, 4, 8, 8          # in_channels = 256
    FC = 128                          # fc_feat_channels

    key = jax.random.PRNGKey(0)
    kx, k6w, k6b, k7w, k7b = jax.random.split(key, 5)

    x = jax.random.normal(kx, (N, C, H, W), dtype=jnp.float32)
    in_channels = C * H * W
    w6 = jax.random.normal(k6w, (FC, in_channels), dtype=jnp.float32) * 0.02
    b6 = jax.random.normal(k6b, (FC,), dtype=jnp.float32) * 0.01
    w7 = jax.random.normal(k7w, (FC, FC), dtype=jnp.float32) * 0.02
    b7 = jax.random.normal(k7b, (FC,), dtype=jnp.float32) * 0.01

    ref = _reference(x, w6, b6, w7, b7)

    # f32 path (default): tight tolerance.
    out = two_fc_head(x, w6, b6, w7, b7)
    jax.block_until_ready(out)
    assert out.shape == (N, FC)
    assert jnp.allclose(out, ref, atol=1e-4, rtol=1e-4)

    # bf16 MXU path (v6e/v7x-friendly): f32 accumulate/epilogue, looser tol.
    out_bf16 = two_fc_head(x, w6, b6, w7, b7, compute_dtype=jnp.bfloat16)
    jax.block_until_ready(out_bf16)
    assert out_bf16.shape == (N, FC)
    assert jnp.allclose(out_bf16, ref, atol=2e-2, rtol=2e-2)

    print("KERNEL_OK")
</pallas_src>

<mosaic_0001>
module attributes {stable_mosaic.version = 11 : i64} {
  func.func @_two_fc_kernel(%arg0: i32, %arg1: i32, %arg2: memref<8x256xf32, #tpu.memory_space<vmem>>, %arg3: memref<128x256xf32, #tpu.memory_space<vmem>>, %arg4: memref<1x128xf32, #tpu.memory_space<vmem>>, %arg5: memref<128x128xf32, #tpu.memory_space<vmem>>, %arg6: memref<1x128xf32, #tpu.memory_space<vmem>>, %arg7: memref<8x128xf32, #tpu.memory_space<vmem>>, %arg8: memref<8x128xf32, #tpu.memory_space<vmem>>) attributes {dimension_semantics = [#tpu.dimension_semantics<parallel>, #tpu.dimension_semantics<arbitrary>], iteration_bounds = array<i64: 1, 1>, scalar_prefetch = 0 : i64, scratch_operands = 1 : i64, tpu.core_type = #tpu.core_type<tc>, window_params = [{transform_indices = @transform_0, window_bounds = array<i64: 8, 256>}, {transform_indices = @transform_1, window_bounds = array<i64: 128, 256>}, {pipeline_mode = #tpu.pipeline_mode<synchronous>, transform_indices = @transform_2, window_bounds = array<i64: 1, 128>}, {pipeline_mode = #tpu.pipeline_mode<synchronous>, transform_indices = @transform_3, window_bounds = array<i64: 128, 128>}, {pipeline_mode = #tpu.pipeline_mode<synchronous>, transform_indices = @transform_4, window_bounds = array<i64: 1, 128>}, {transform_indices = @transform_5, window_bounds = array<i64: 8, 128>}]} {
    %c0_i32 = arith.constant 0 : i32
    %0 = arith.cmpi eq, %arg1, %c0_i32 : i32
    %1 = arith.extui %0 : i1 to i32
    %c0_i32_0 = arith.constant 0 : i32
    %2 = arith.cmpi ne, %1, %c0_i32_0 : i32
    scf.if %2 {
      %cst_10 = arith.constant 0.000000e+00 : f32
      %12 = vector.broadcast %cst_10 : f32 to vector<8x128xf32>
      %c0_11 = arith.constant 0 : index
      %c0_12 = arith.constant 0 : index
      %13 = vector.load %arg8[%c0_11, %c0_12] : memref<8x128xf32, #tpu.memory_space<vmem>>, vector<8x128xf32>
      tpu.vector_store %arg8[%c0_11, %c0_12], %12 {strides = array<i32>} : memref<8x128xf32, #tpu.memory_space<vmem>>, vector<8x128xf32>,
    } else {
    }
    %c0 = arith.constant 0 : index
    %c0_1 = arith.constant 0 : index
    %3 = vector.load %arg8[%c0, %c0_1] : memref<8x128xf32, #tpu.memory_space<vmem>>, vector<8x128xf32>
    %c0_2 = arith.constant 0 : index
    %c0_3 = arith.constant 0 : index
    %4 = vector.load %arg2[%c0_2, %c0_3] : memref<8x256xf32, #tpu.memory_space<vmem>>, vector<8x256xf32>
    %c0_4 = arith.constant 0 : index
    %c0_5 = arith.constant 0 : index
    %5 = vector.load %arg3[%c0_4, %c0_5] : memref<128x256xf32, #tpu.memory_space<vmem>>, vector<128x256xf32>
    %cst = arith.constant dense<0.000000e+00> : vector<8x128xf32>
    %6 = tpu.matmul %4, %5, %cst {dimension_numbers = #tpu.dot_dimension_numbers<[1], [1], [0], [0], [0, 0, 1, 0], [], []>} : vector<8x256xf32>, vector<128x256xf32>, vector<8x128xf32> -> vector<8x128xf32>
    %7 = arith.addf %3, %6 : vector<8x128xf32>
    %c0_6 = arith.constant 0 : index
    %c0_7 = arith.constant 0 : index
    %8 = vector.load %arg8[%c0_6, %c0_7] : memref<8x128xf32, #tpu.memory_space<vmem>>, vector<8x128xf32>
    tpu.vector_store %arg8[%c0_6, %c0_7], %7 {strides = array<i32>} : memref<8x128xf32, #tpu.memory_space<vmem>>, vector<8x128xf32>,
    %c0_i32_8 = arith.constant 0 : i32
    %9 = arith.cmpi eq, %arg1, %c0_i32_8 : i32
    %10 = arith.extui %9 : i1 to i32
    %c0_i32_9 = arith.constant 0 : i32
    %11 = arith.cmpi ne, %10, %c0_i32_9 : i32
    scf.if %11 {
      %c0_10 = arith.constant 0 : index
      %c0_11 = arith.constant 0 : index
      %12 = vector.load %arg8[%c0_10, %c0_11] : memref<8x128xf32, #tpu.memory_space<vmem>>, vector<8x128xf32>
      %c0_12 = arith.constant 0 : index
      %c0_13 = arith.constant 0 : index
      %13 = vector.load %arg4[%c0_12, %c0_13] : memref<1x128xf32, #tpu.memory_space<vmem>>, vector<1x128xf32>
      %14 = vector.broadcast %13 : vector<1x128xf32> to vector<8x128xf32>
      %15 = arith.addf %12, %14 : vector<8x128xf32>
      %cst_14 = arith.constant 0.000000e+00 : f32
      %16 = vector.broadcast %cst_14 : f32 to vector<8x128xf32>
      %17 = arith.maximumf %15, %16 : vector<8x128xf32>
      %c0_15 = arith.constant 0 : index
      %c0_16 = arith.constant 0 : index
      %18 = vector.load %arg5[%c0_15, %c0_16] : memref<128x128xf32, #tpu.memory_space<vmem>>, vector<128x128xf32>
      %cst_17 = arith.constant dense<0.000000e+00> : vector<8x128xf32>
      %19 = tpu.matmul %17, %18, %cst_17 {dimension_numbers = #tpu.dot_dimension_numbers<[1], [1], [0], [0], [0, 0, 1, 0], [], []>} : vector<8x128xf32>, vector<128x128xf32>, vector<8x128xf32> -> vector<8x128xf32>
      %c0_18 = arith.constant 0 : index
      %c0_19 = arith.constant 0 : index
      %20 = vector.load %arg6[%c0_18, %c0_19] : memref<1x128xf32, #tpu.memory_space<vmem>>, vector<1x128xf32>
      %21 = vector.broadcast %20 : vector<1x128xf32> to vector<8x128xf32>
      %22 = arith.addf %19, %21 : vector<8x128xf32>
      %cst_20 = arith.constant 0.000000e+00 : f32
      %23 = vector.broadcast %cst_20 : f32 to vector<8x128xf32>
      %24 = arith.maximumf %22, %23 : vector<8x128xf32>
      %c0_21 = arith.constant 0 : index
      %c0_22 = arith.constant 0 : index
      %25 = vector.load %arg7[%c0_21, %c0_22] : memref<8x128xf32, #tpu.memory_space<vmem>>, vector<8x128xf32>
      tpu.vector_store %arg7[%c0_21, %c0_22], %24 {strides = array<i32>} : memref<8x128xf32, #tpu.memory_space<vmem>>, vector<8x128xf32>,
    } else {
    }
    return
  }
  func.func @transform_0(%arg0: i32, %arg1: i32) -> (i32, i32) {
    %c0_i32 = arith.constant 0 : i32
    return %arg0, %arg1 : i32, i32
  }
  func.func @transform_1(%arg0: i32, %arg1: i32) -> (i32, i32) {
    %c0_i32 = arith.constant 0 : i32
    %c0_i32_0 = arith.constant 0 : i32
    return %c0_i32, %arg1 : i32, i32
  }
  func.func @transform_2(%arg0: i32, %arg1: i32) -> (i32, i32) {
    %c0_i32 = arith.constant 0 : i32
    %c0_i32_0 = arith.constant 0 : i32
    %c0_i32_1 = arith.constant 0 : i32
    return %c0_i32, %c0_i32_0 : i32, i32
  }
  func.func @transform_3(%arg0: i32, %arg1: i32) -> (i32, i32) {
    %c0_i32 = arith.constant 0 : i32
    %c0_i32_0 = arith.constant 0 : i32
    %c0_i32_1 = arith.constant 0 : i32
    return %c0_i32, %c0_i32_0 : i32, i32
  }
  func.func @transform_4(%arg0: i32, %arg1: i32) -> (i32, i32) {
    %c0_i32 = arith.constant 0 : i32
    %c0_i32_0 = arith.constant 0 : i32
    %c0_i32_1 = arith.constant 0 : i32
    return %c0_i32, %c0_i32_0 : i32, i32
  }
  func.func @transform_5(%arg0: i32, %arg1: i32) -> (i32, i32) {
    %c0_i32 = arith.constant 0 : i32
    %c0_i32_0 = arith.constant 0 : i32
    return %arg0, %c0_i32 : i32, i32
  }
}

</mosaic_0001>

<llo_original>
// kernel: tpu_custom_call.1
$region0: #{tpu_custom_call.1}
  #allocation0 [shape = 'u32[]', space=smem, size = 0x4, offset = 0x4, fixed_abs, tag = 'smem constant byte address 0x4 - core index']
  #allocation1 [shape = 'u32[144,128]{1,0:T(1,128)}', space=vmem, size = 0x12000, scoped, tag = 'internal scratch']
  #allocation2 [shape = 'f32[8,128]{1,0:T(8,128)}', space=vmem, size = 0x1000, scoped, tag = 'scratch operand']
  %s0 = inlined_call_operand.hbm [shape: f32[8,256], index: 0, kind: input, shape index: {}]
  %s1 = inlined_call_operand.hbm [shape: f32[128,256], index: 1, kind: input, shape index: {}]
  %s2 = inlined_call_operand.vmem [shape: f32[1,128], index: 2, kind: input, shape index: {}]
  %s3 = inlined_call_operand.hbm [shape: f32[128,128], index: 3, kind: input, shape index: {}]
  %s4 = inlined_call_operand.vmem [shape: f32[1,128], index: 4, kind: input, shape index: {}]
  %s5 = inlined_call_operand.hbm [shape: f32[8,128], index: 5, kind: output, shape index: {}]
  %s6 = sld [smem:[#allocation0]]
  $region50: #{tpu_custom_call.1} parent=0
    _
  %s8 = ssub.s32 1, %s6
  %s9 = scalar_select 0, %s8, %s6
  $region1: #{tpu_custom_call.1} parent=0
    #allocation3 [shape = 'u8[8192]{0}', space=vmem, size = 0x2000, scoped, tag = 'input window, operand 0, single buffered']
    #allocation4 [shape = 's32[1]{0}', space=sflag, size = 0x4, scoped, tag = 'scoped memory for tpu_custom_call.1']
    #allocation5 [shape = 's32[1]{0}', space=sflag, size = 0x4, scoped, tag = 'scoped memory for tpu_custom_call.1']
    #allocation6 [shape = 'u8[131072]{0}', space=vmem, size = 0x20000, scoped, tag = 'input window, operand 1, single buffered']
    #allocation7 [shape = 's32[1]{0}', space=sflag, size = 0x4, scoped, tag = 'scoped memory for tpu_custom_call.1']
    #allocation8 [shape = 'u8[65536]{0}', space=vmem, size = 0x10000, scoped, tag = 'input window, operand 3, single buffered']
    #allocation9 [shape = 'u8[4096]{0}', space=vmem, size = 0x1000, scoped, tag = 'output window, operand 0, single buffered']
    %10 = vsyncpa [#allocation4], 0
    %11 = vsyncpa [#allocation7], 0
    %12 = vsyncpa [#allocation5], 0
    // Predicated region
    $region2: #{tpu_custom_call.1} parent=1 // pred_check
      _
    $region3: #{tpu_custom_call.1} parent=1 // pred_check_branch
      %14 = sbr.rel (0) target = $region5
    $region4: #{tpu_custom_call.1} parent=1 // pred_region
      %s16 = ssub.s32 256, 256
      %17 = vsyncadd [#allocation4], %s16
      %s19 = sshll.u32 [#allocation3], 4
      %s20 = int_to_ptr.vmem [resolvable:$true] %s19
      %22 = dma.hbm_to_vmem [thread:$0]  %s0, 256, %s20, [#allocation4]
    $region5: #{tpu_custom_call.1} parent=1 // pred_fallthru
      _
    // Predicated region
    $region6: #{tpu_custom_call.1} parent=1 // pred_check
      _
    $region7: #{tpu_custom_call.1} parent=1 // pred_check_branch
      %24 = sbr.rel (0) target = $region9
    $region8: #{tpu_custom_call.1} parent=1 // pred_region
      %s26 = ssub.s32 4096, 4096
      %27 = vsyncadd [#allocation7], %s26
      %s28 = sshll.u32 [#allocation6], 4
      %s29 = int_to_ptr.vmem [resolvable:$true] %s28
      %34 = dma.hbm_to_vmem [thread:$0]  %s1, 4096, %s29, [#allocation7], 256, 256, 16
    $region9: #{tpu_custom_call.1} parent=1 // pred_fallthru
      _
    // Predicated region
    $region10: #{tpu_custom_call.1} parent=1 // pred_check
      _
    $region11: #{tpu_custom_call.1} parent=1 // pred_check_branch
      %36 = sbr.rel (0) target = $region13
    $region12: #{tpu_custom_call.1} parent=1 // pred_region
      _
    $region13: #{tpu_custom_call.1} parent=1 // pred_fallthru
      _
    // Predicated region
    $region14: #{tpu_custom_call.1} parent=1 // pred_check
      _
    $region15: #{tpu_custom_call.1} parent=1 // pred_check_branch
      %38 = sbr.rel (0) target = $region17
    $region16: #{tpu_custom_call.1} parent=1 // pred_region
      %s40 = ssub.s32 2048, 2048
      %41 = vsyncadd [#allocation7], %s40
      %s42 = sshll.u32 [#allocation8], 4
      %s43 = int_to_ptr.vmem [resolvable:$true] %s42
      %48 = dma.hbm_to_vmem [thread:$0]  %s3, 2048, %s43, [#allocation7], 128, 128, 8
    $region17: #{tpu_custom_call.1} parent=1 // pred_fallthru
      _
    // Predicated region
    $region18: #{tpu_custom_call.1} parent=1 // pred_check
      _
    $region19: #{tpu_custom_call.1} parent=1 // pred_check_branch
      %50 = sbr.rel (0) target = $region21
    $region20: #{tpu_custom_call.1} parent=1 // pred_region
      _
    $region21: #{tpu_custom_call.1} parent=1 // pred_fallthru
      _
    // Predicated region
    $region22: #{tpu_custom_call.1} parent=1 // pred_check
      _
    $region23: #{tpu_custom_call.1} parent=1 // pred_check_branch
      %52 = sbr.rel (0) target = $region25
    $region24: #{tpu_custom_call.1} parent=1 // pred_region
      %53 = dma.done [#allocation4], 256
    $region25: #{tpu_custom_call.1} parent=1 // pred_fallthru
      _
    // Predicated region
    $region26: #{tpu_custom_call.1} parent=1 // pred_check
      _
    $region27: #{tpu_custom_call.1} parent=1 // pred_check_branch
      %55 = sbr.rel (0) target = $region29
    $region28: #{tpu_custom_call.1} parent=1 // pred_region
      %56 = dma.done [#allocation7], 4096
    $region29: #{tpu_custom_call.1} parent=1 // pred_fallthru
      _
    // Predicated region
    $region30: #{tpu_custom_call.1} parent=1 // pred_check
      _
    $region31: #{tpu_custom_call.1} parent=1 // pred_check_branch
      %58 = sbr.rel (0) target = $region33
    $region32: #{tpu_custom_call.1} parent=1 // pred_region
      %59 = dma.done [#allocation7], 2048
    $region33: #{tpu_custom_call.1} parent=1 // pred_fallthru
      _
    %p60 = scmp.eq.s32.totalorder 0, 0
    // Predicated region
    $region34: #{tpu_custom_call.1} parent=1 // pred_check
      %p61 = pneg %p60
    $region35: #{tpu_custom_call.1} parent=1 // pred_check_branch
      %63 = sbr.rel (%p61) target = $region37
    $region36: #{tpu_custom_call.1} parent=1 // pred_region
      %64 = vst [vmem:[#allocation2] sm:$0xff] 0.0
    $region37: #{tpu_custom_call.1} parent=1 // pred_fallthru
      _
    %v65 = vld [vmem:[#allocation2] sm:$0xff]
    %v66 = vld [vmem:[#allocation3] sm:$0xff]
    %v67 = vld [vmem:[#allocation3 + $0x8] sm:$0xff]
    %v68 = vld [vmem:[#allocation6] sm:$0xff]
    %v69 = vld [vmem:[#allocation6 + $0x8] sm:$0xff]
    %v70 = vld [vmem:[#allocation6 + $0x10] sm:$0xff]
    %v71 = vld [vmem:[#allocation6 + $0x18] sm:$0xff]
    %v72 = vld [vmem:[#allocation6 + $0x20] sm:$0xff]
    %v73 = vld [vmem:[#allocation6 + $0x28] sm:$0xff]
    %v74 = vld [vmem:[#allocation6 + $0x30] sm:$0xff]
    %v75 = vld [vmem:[#allocation6 + $0x38] sm:$0xff]
    %v76 = vld [vmem:[#allocation6 + $0x40] sm:$0xff]
    %v77 = vld [vmem:[#allocation6 + $0x48] sm:$0xff]
    %v78 = vld [vmem:[#allocation6 + $0x50] sm:$0xff]
    %v79 = vld [vmem:[#allocation6 + $0x58] sm:$0xff]
    %v80 = vld [vmem:[#allocation6 + $0x60] sm:$0xff]
    %v81 = vld [vmem:[#allocation6 + $0x68] sm:$0xff]
    %v82 = vld [vmem:[#allocation6 + $0x70] sm:$0xff]
    %v83 = vld [vmem:[#allocation6 + $0x78] sm:$0xff]
    %v84 = vld [vmem:[#allocation6 + $0x80] sm:$0xff]
    %v85 = vld [vmem:[#allocation6 + $0x88] sm:$0xff]
    %v86 = vld [vmem:[#allocation6 + $0x90] sm:$0xff]
    %v87 = vld [vmem:[#allocation6 + $0x98] sm:$0xff]
    %v88 = vld [vmem:[#allocation6 + $0xa0] sm:$0xff]
    %v89 = vld [vmem:[#allocation6 + $0xa8] sm:$0xff]
    %v90 = vld [vmem:[#allocation6 + $0xb0] sm:$0xff]
    %v91 = vld [vmem:[#allocation6 + $0xb8] sm:$0xff]
    %v92 = vld [vmem:[#allocation6 + $0xc0] sm:$0xff]
    %v93 = vld [vmem:[#allocation6 + $0xc8] sm:$0xff]
    %v94 = vld [vmem:[#allocation6 + $0xd0] sm:$0xff]
    %v95 = vld [vmem:[#allocation6 + $0xd8] sm:$0xff]
    %v96 = vld [vmem:[#allocation6 + $0xe0] sm:$0xff]
    %v97 = vld [vmem:[#allocation6 + $0xe8] sm:$0xff]
    %v98 = vld [vmem:[#allocation6 + $0xf0] sm:$0xff]
    %v99 = vld [vmem:[#allocation6 + $0xf8] sm:$0xff]
    %100 = vmatprep.subr.mxu0 %v69
    %101 = vmatpush1.xpose.msra.mxu0 %v68
    %102 = vmatprep.subr.mxu0 %v71
    %103 = vmatpush1.xpose.msra.mxu0 %v70
    %104 = vmatprep.subr.mxu0 %v73
    %105 = vmatpush1.xpose.msra.mxu0 %v72
    %106 = vmatprep.subr.mxu0 %v75
    %107 = vmatpush1.xpose.msra.mxu0 %v74
    %108 = vmatprep.subr.mxu0 %v77
    %109 = vmatpush1.xpose.msra.mxu0 %v76
    %110 = vmatprep.subr.mxu0 %v79
    %111 = vmatpush1.xpose.msra.mxu0 %v78
    %112 = vmatprep.subr.mxu0 %v81
    %113 = vmatpush1.xpose.msra.mxu0 %v80
    %114 = vmatprep.subr.mxu0 %v83
    %115 = vmatpush1.xpose.msra.mxu0 %v82
    %116 = vmatprep.subr.mxu0 %v85
    %117 = vmatpush1.xpose.msra.mxu0 %v84
    %118 = vmatprep.subr.mxu0 %v87
    %119 = vmatpush1.xpose.msra.mxu0 %v86
    %120 = vmatprep.subr.mxu0 %v89
    %121 = vmatpush1.xpose.msra.mxu0 %v88
    %122 = vmatprep.subr.mxu0 %v91
    %123 = vmatpush1.xpose.msra.mxu0 %v90
    %124 = vmatprep.subr.mxu0 %v93
    %125 = vmatpush1.xpose.msra.mxu0 %v92
    %126 = vmatprep.subr.mxu0 %v95
    %127 = vmatpush1.xpose.msra.mxu0 %v94
    %128 = vmatprep.subr.mxu0 %v97
    %129 = vmatpush1.xpose.msra.mxu0 %v96
    %130 = vmatprep.subr.mxu0 %v99
    %131 = vmatpush1.xpose.msra.mxu0 %v98
    %132 = vmatprep.subr.mxu0 0.0
    %133 = vmatpush1.xpose.msra.mxu0 0.0
    %134 = vmatprep.subr.mxu0 0.0
    %135 = vmatpush1.xpose.msra.mxu0 0.0
    %136 = vmatprep.subr.mxu0 0.0
    %137 = vmatpush1.xpose.msra.mxu0 0.0
    %138 = vmatprep.subr.mxu0 0.0
    %139 = vmatpush1.xpose.msra.mxu0 0.0
    %140 = vmatprep.subr.mxu0 0.0
    %141 = vmatpush1.xpose.msra.mxu0 0.0
    %142 = vmatprep.subr.mxu0 0.0
    %143 = vmatpush1.xpose.msra.mxu0 0.0
    %144 = vmatprep.subr.mxu0 0.0
    %145 = vmatpush1.xpose.msra.mxu0 0.0
    %146 = vmatprep.subr.mxu0 0.0
    %147 = vmatpush1.xpose.msra.mxu0 0.0
    %148 = vmatprep.subr.mxu0 0.0
    %149 = vmatpush1.xpose.msra.mxu0 0.0
    %150 = vmatprep.subr.mxu0 0.0
    %151 = vmatpush1.xpose.msra.mxu0 0.0
    %152 = vmatprep.subr.mxu0 0.0
    %153 = vmatpush1.xpose.msra.mxu0 0.0
    %154 = vmatprep.subr.mxu0 0.0
    %155 = vmatpush1.xpose.msra.mxu0 0.0
    %156 = vmatprep.subr.mxu0 0.0
    %157 = vmatpush1.xpose.msra.mxu0 0.0
    %158 = vmatprep.subr.mxu0 0.0
    %159 = vmatpush1.xpose.msra.mxu0 0.0
    %160 = vmatprep.subr.mxu0 0.0
    %161 = vmatpush1.xpose.msra.mxu0 0.0
    %162 = vmatprep.subr.mxu0 0.0
    %163 = vmatpush1.xpose.msra.mxu0 0.0
    %164 = vmatprep.mubr.f32.mxu0 %v67
    %165 = vmatmul.mubr.f32.gmra.mrb[0].mxu0 %v66
    %v166 = vpop.f32.mrb[0].mxu0
    %v167 = vadd.f32 0.0, %v166
    %v168 = vpop.f32.mrb[0].mxu0
    %169 = vdwg.mxu0
    %v170 = vadd.f32 %v65, %v167
    %171 = vst [vmem:[#allocation2] sm:$0xff] %v170
    // Predicated region
    $region38: #{tpu_custom_call.1} parent=1 // pred_check
      %p172 = pneg %p60
    $region39: #{tpu_custom_call.1} parent=1 // pred_check_branch
      %174 = sbr.rel (%p172) target = $region41
    $region40: #{tpu_custom_call.1} parent=1 // pred_region
      %v175 = vld [vmem:[#allocation2] sm:$0xff]
      %v176 = vld [vmem:[%s2] sm:$0x1]
      %v178 = vlaneseq
      %v179 = vshrl.u32 %v178, 7
      %v180 = vsub.s32 0, %v179
      %v181 = vrot.slane %v176, %v180
      %v183 = vadd.f32 %v175, %v181
      %v184 = vmax.f32 %v183, 0.0
      %v185 = vld [vmem:[#allocation8] sm:$0xff]
      %v186 = vld [vmem:[#allocation8 + $0x8] sm:$0xff]
      %v187 = vld [vmem:[#allocation8 + $0x10] sm:$0xff]
      %v188 = vld [vmem:[#allocation8 + $0x18] sm:$0xff]
      %v189 = vld [vmem:[#allocation8 + $0x20] sm:$0xff]
      %v190 = vld [vmem:[#allocation8 + $0x28] sm:$0xff]
      %v191 = vld [vmem:[#allocation8 + $0x30] sm:$0xff]
      %v192 = vld [vmem:[#allocation8 + $0x38] sm:$0xff]
      %v193 = vld [vmem:[#allocation8 + $0x40] sm:$0xff]
      %v194 = vld [vmem:[#allocation8 + $0x48] sm:$0xff]
      %v195 = vld [vmem:[#allocation8 + $0x50] sm:$0xff]
      %v196 = vld [vmem:[#allocation8 + $0x58] sm:$0xff]
      %v197 = vld [vmem:[#allocation8 + $0x60] sm:$0xff]
      %v198 = vld [vmem:[#allocation8 + $0x68] sm:$0xff]
      %v199 = vld [vmem:[#allocation8 + $0x70] sm:$0xff]
      %v200 = vld [vmem:[#allocation8 + $0x78] sm:$0xff]
      %v201 = vld [vmem:[%s4] sm:$0x1]
      %v203 = vlaneseq
      %v204 = vshrl.u32 %v203, 7
      %v205 = vsub.s32 0, %v204
      %v206 = vrot.slane %v201, %v205
      %208 = vmatprep.subr.mxu0 0.0
      %209 = vmatpush1.xpose.msra.mxu0 %v185
      %210 = vmatprep.subr.mxu0 0.0
      %211 = vmatpush1.xpose.msra.mxu0 %v186
      %212 = vmatprep.subr.mxu0 0.0
      %213 = vmatpush1.xpose.msra.mxu0 %v187
      %214 = vmatprep.subr.mxu0 0.0
      %215 = vmatpush1.xpose.msra.mxu0 %v188
      %216 = vmatprep.subr.mxu0 0.0
      %217 = vmatpush1.xpose.msra.mxu0 %v189
      %218 = vmatprep.subr.mxu0 0.0
      %219 = vmatpush1.xpose.msra.mxu0 %v190
      %220 = vmatprep.subr.mxu0 0.0
      %221 = vmatpush1.xpose.msra.mxu0 %v191
      %222 = vmatprep.subr.mxu0 0.0
      %223 = vmatpush1.xpose.msra.mxu0 %v192
      %224 = vmatprep.subr.mxu0 0.0
      %225 = vmatpush1.xpose.msra.mxu0 %v193
      %226 = vmatprep.subr.mxu0 0.0
      %227 = vmatpush1.xpose.msra.mxu0 %v194
      %228 = vmatprep.subr.mxu0 0.0
      %229 = vmatpush1.xpose.msra.mxu0 %v195
      %230 = vmatprep.subr.mxu0 0.0
      %231 = vmatpush1.xpose.msra.mxu0 %v196
      %232 = vmatprep.subr.mxu0 0.0
      %233 = vmatpush1.xpose.msra.mxu0 %v197
      %234 = vmatprep.subr.mxu0 0.0
      %235 = vmatpush1.xpose.msra.mxu0 %v198
      %236 = vmatprep.subr.mxu0 0.0
      %237 = vmatpush1.xpose.msra.mxu0 %v199
      %238 = vmatprep.subr.mxu0 0.0
      %239 = vmatpush1.xpose.msra.mxu0 %v200
      %240 = vmatprep.subr.mxu0 0.0
      %241 = vmatpush1.xpose.msra.mxu0 0.0
      %242 = vmatprep.subr.mxu0 0.0
      %243 = vmatpush1.xpose.msra.mxu0 0.0
      %244 = vmatprep.subr.mxu0 0.0
      %245 = vmatpush1.xpose.msra.mxu0 0.0
      %246 = vmatprep.subr.mxu0 0.0
      %247 = vmatpush1.xpose.msra.mxu0 0.0
      %248 = vmatprep.subr.mxu0 0.0
      %249 = vmatpush1.xpose.msra.mxu0 0.0
      %250 = vmatprep.subr.mxu0 0.0
      %251 = vmatpush1.xpose.msra.mxu0 0.0
      %252 = vmatprep.subr.mxu0 0.0
      %253 = vmatpush1.xpose.msra.mxu0 0.0
      %254 = vmatprep.subr.mxu0 0.0
      %255 = vmatpush1.xpose.msra.mxu0 0.0
      %256 = vmatprep.subr.mxu0 0.0
      %257 = vmatpush1.xpose.msra.mxu0 0.0
      %258 = vmatprep.subr.mxu0 0.0
      %259 = vmatpush1.xpose.msra.mxu0 0.0
      %260 = vmatprep.subr.mxu0 0.0
      %261 = vmatpush1.xpose.msra.mxu0 0.0
      %262 = vmatprep.subr.mxu0 0.0
      %263 = vmatpush1.xpose.msra.mxu0 0.0
      %264 = vmatprep.subr.mxu0 0.0
      %265 = vmatpush1.xpose.msra.mxu0 0.0
      %266 = vmatprep.subr.mxu0 0.0
      %267 = vmatpush1.xpose.msra.mxu0 0.0
      %268 = vmatprep.subr.mxu0 0.0
      %269 = vmatpush1.xpose.msra.mxu0 0.0
      %270 = vmatprep.subr.mxu0 0.0
      %271 = vmatpush1.xpose.msra.mxu0 0.0
      %272 = vmatprep.mubr.f32.mxu0 0.0
      %273 = vmatmul.mubr.f32.gmra.mrb[0].mxu0 %v184
      %v274 = vpop.f32.mrb[0].mxu0
      %v275 = vadd.f32 %v206, %v274
      %v276 = vpop.f32.mrb[0].mxu0
      %277 = vdwg.mxu0
      %v278 = vmax.f32 %v275, 0.0
      %279 = vst [vmem:[#allocation9] sm:$0xff] %v278
    $region41: #{tpu_custom_call.1} parent=1 // pred_fallthru
      _
    // Predicated region
    $region42: #{tpu_custom_call.1} parent=1 // pred_check
      _
    $region43: #{tpu_custom_call.1} parent=1 // pred_check_branch
      %281 = sbr.rel (0) target = $region45
    $region44: #{tpu_custom_call.1} parent=1 // pred_region
      %s283 = ssub.s32 128, 128
      %284 = vsyncadd [#allocation5], %s283
      %s286 = sshll.u32 [#allocation9], 4
      %s287 = int_to_ptr.vmem [resolvable:$true] %s286
      %289 = dma.vmem_to_hbm [thread:$0]  %s287, 128, %s5, [#allocation5]
    $region45: #{tpu_custom_call.1} parent=1 // pred_fallthru
      _
    // Predicated region
    $region46: #{tpu_custom_call.1} parent=1 // pred_check
      _
    $region47: #{tpu_custom_call.1} parent=1 // pred_check_branch
      %291 = sbr.rel (0) target = $region49
    $region48: #{tpu_custom_call.1} parent=1 // pred_region
      %292 = dma.done [#allocation5], 128
    $region49: #{tpu_custom_call.1} parent=1 // pred_fallthru
      _
    %293 = vsyncpa [#allocation4], 1
    %294 = vsyncpa [#allocation7], 1
    %295 = vsyncpa [#allocation5], 1

</llo_original>
